<compile_context>
chip_gen: v7x
topology: tpu7x:2x2x1
jax: 0.10.0
libtpu: 0.0.40
codegen_flags: <defaults>
</compile_context>

<pallas_src>
import functools

import jax
import jax.numpy as jnp
from jax.experimental import pallas as pl
from jax.experimental.pallas import tpu as pltpu


_LANE = 128


def _round_up(x, m):
    return ((x + m - 1) // m) * m


def _pad2(a, rows, cols):
    return jnp.pad(a, ((0, rows - a.shape[0]), (0, cols - a.shape[1])))


def _vmem_params():
    """Generation-aware (fused-path VMEM budget, vmem_limit_bytes)."""
    cap = 64 * 1024 * 1024
    try:
        info = pltpu.get_tpu_info()
        cap = int(getattr(info, "vmem_capacity_bytes", cap))
    except Exception:
        pass
    if cap >= 96 * 1024 * 1024:                 # v5e / v6e: 128 MiB physical VMEM
        return 80 * 1024 * 1024, 100 * 1024 * 1024
    return 40 * 1024 * 1024, 48 * 1024 * 1024   # v7x: 64 MiB per TensorCore


# ---------------------------------------------------------------------------
# Fused kernel: per-chain layer loop + alpha combine in one pallas_call.
#   grid = (2,) "parallel"  -> chain 0: A_hat/E01, chain 1: Q0/E02.
#   Each chain writes its own (Np, Dp) f32 slab (summed outside the kernel),
#   so on v7x the two chains run on different TensorCores.
#   M (A_hat / Q0) is single-buffered: ANY-space HBM input + one VMEM scratch
#   + explicit async copy (saves Np^2*2 bytes vs auto double-buffering).
# ---------------------------------------------------------------------------
def _fused_kernel(alpha_ref, e_ref, m_hbm, o_ref, m_vmem, x_vmem, sem,
                  *, n_layers):
    c = pl.program_id(0)
    cp = pltpu.make_async_copy(m_hbm.at[c], m_vmem, sem.at[0])
    cp.start()

    e0 = e_ref[0]                                   # (Np, Dp) f32, exact
    o_ref[0] = alpha_ref[0] * e0                    # layer-0 term (0.5 prefolded)
    x_vmem[...] = e0.astype(jnp.bfloat16)           # bf16 layer state

    cp.wait()
    m = m_vmem[...]                                 # (Np, Np) bf16, VMEM-resident
    for l in range(n_layers):                       # static, unrolled layer loop
        xn = jnp.dot(m, x_vmem[...], preferred_element_type=jnp.float32)
        o_ref[0] += alpha_ref[l + 1] * xn
        x_vmem[...] = xn.astype(jnp.bfloat16)


def _fused_forward(m_stack, e_stack, alphas_half, n_layers, vmem_limit):
    _, np_, dp = e_stack.shape
    kernel = functools.partial(_fused_kernel, n_layers=n_layers)
    out = pl.pallas_call(
        kernel,
        out_shape=jax.ShapeDtypeStruct((2, np_, dp), jnp.float32),
        grid_spec=pltpu.PrefetchScalarGridSpec(
            num_scalar_prefetch=1,                  # 0.5*alphas -> SMEM
            grid=(2,),                              # chain axis
            in_specs=[
                pl.BlockSpec((1, np_, dp), lambda c, a: (c, 0, 0)),  # E01 / E02
                pl.BlockSpec(memory_space=pl.ANY),                   # M stack (HBM)
            ],
            out_specs=pl.BlockSpec((1, np_, dp), lambda c, a: (c, 0, 0)),
            scratch_shapes=[
                pltpu.VMEM((np_, np_), jnp.bfloat16),   # single-buffered M
                pltpu.VMEM((np_, dp), jnp.bfloat16),    # layer state X
                pltpu.SemaphoreType.DMA((1,)),
            ],
        ),
        compiler_params=pltpu.CompilerParams(
            dimension_semantics=("parallel",),
            vmem_limit_bytes=vmem_limit),
    )(alphas_half, e_stack, m_stack)
    return out[0] + out[1]


# ---------------------------------------------------------------------------
# Streaming fallback kernel (large N): ONE call per layer handles BOTH chains.
#   grid = (chain "parallel", rows "parallel", K "arbitrary" innermost)
#   out0 = M_c @ X_c                            (next layer's embeddings, bf16)
#   out1 = acc_c + (0.5*alpha) * out0           (fused combine, f32, aliased)
#   X is VMEM-resident per chain (full (Np, Dp) bf16 slab, DMA'd once per
#   chain) when it fits the budget; otherwise a K-slab per step.
# ---------------------------------------------------------------------------
def _prop_acc_kernel(alpha_ref, m_ref, x_ref, acc_ref, xo_ref, ao_ref, psum_ref,
                     *, tk, x_resident):
    k = pl.program_id(2)

    @pl.when(k == 0)
    def _():
        psum_ref[...] = jnp.zeros_like(psum_ref)

    if x_resident:
        ks = pl.multiple_of(k * tk, tk)
        x_blk = x_ref[:, pl.ds(ks, tk), :][0]       # (tk, Dp) slice of resident X
    else:
        x_blk = x_ref[0]                            # (tk, Dp) K-slab
    psum_ref[...] += jnp.dot(m_ref[0], x_blk, preferred_element_type=jnp.float32)

    @pl.when(k == pl.num_programs(2) - 1)
    def _():
        xn = psum_ref[...]
        xo_ref[0] = xn.astype(xo_ref.dtype)
        ao_ref[0] = acc_ref[0] + alpha_ref[0] * xn


def _pick_tm(n):
    # prefer large tiles but keep >=2 row blocks per chain for megacore balance
    for c in (512, 256, 128):
        if n % c == 0 and n // c >= 2:
            return c
    for c in (512, 256, 128, 64, 32, 16, 8):
        if n % c == 0:
            return c
    return n


def _pick_tk(n):
    for c in (1024, 512, 256, 128):
        if n % c == 0:
            return c
    return n


def _stream_vmem_bytes(np_, dp, tm, tk, x_resident):
    m_tiles = 2 * tm * tk * 2                                 # dbl-buffered M (bf16)
    x_bytes = (2 * np_ * dp * 2) if x_resident else (2 * tk * dp * 2)
    acc_in = 2 * tm * dp * 4
    outs = 2 * tm * dp * (2 + 4)
    psum = tm * dp * 4
    return m_tiles + x_bytes + acc_in + outs + psum


def _propagate_accumulate(m_stack, x_stack, acc_stack, alpha_half, budget, limit):
    _, np_, dp = acc_stack.shape
    tm = _pick_tm(np_)
    tk = _pick_tk(np_)
    x_resident = _stream_vmem_bytes(np_, dp, tm, tk, True) <= budget

    if x_resident:
        x_spec = pl.BlockSpec((1, np_, dp), lambda c, i, k, a: (c, 0, 0))
    else:
        x_spec = pl.BlockSpec((1, tk, dp), lambda c, i, k, a: (c, k, 0))

    kernel = functools.partial(_prop_acc_kernel, tk=tk, x_resident=x_resident)
    return pl.pallas_call(
        kernel,
        out_shape=(jax.ShapeDtypeStruct((2, np_, dp), jnp.bfloat16),
                   jax.ShapeDtypeStruct((2, np_, dp), jnp.float32)),
        grid_spec=pltpu.PrefetchScalarGridSpec(
            num_scalar_prefetch=1,
            grid=(2, np_ // tm, np_ // tk),
            in_specs=[
                pl.BlockSpec((1, tm, tk), lambda c, i, k, a: (c, i, k)),  # M tile
                x_spec,                                                   # X
                pl.BlockSpec((1, tm, dp), lambda c, i, k, a: (c, i, 0)),  # acc in
            ],
            out_specs=[
                pl.BlockSpec((1, tm, dp), lambda c, i, k, a: (c, i, 0)),  # next X
                pl.BlockSpec((1, tm, dp), lambda c, i, k, a: (c, i, 0)),  # new acc
            ],
            scratch_shapes=[pltpu.VMEM((tm, dp), jnp.float32)],
        ),
        compiler_params=pltpu.CompilerParams(
            dimension_semantics=("parallel", "parallel", "arbitrary"),
            vmem_limit_bytes=limit),
        input_output_aliases={3: 1},   # acc input buffer reused for acc output
    )(alpha_half.reshape(1).astype(jnp.float32), m_stack, x_stack, acc_stack)


def _tiled_forward(m_stack, e_stack, alphas_half, n_layers, budget, limit):
    acc = alphas_half[0] * e_stack                 # (2, Np, Dp) f32 layer-0 terms
    x = e_stack.astype(jnp.bfloat16)
    # NOTE: X is carried between layers in bf16 (matches MXU operand precision);
    # accumulation stays f32.
    for l in range(n_layers):
        x, acc = _propagate_accumulate(m_stack, x, acc, alphas_half[l + 1],
                                       budget, limit)
    return acc[0] + acc[1]


# ---------------------------------------------------------------------------
# QGCN forward (Pallas-backed)
# ---------------------------------------------------------------------------
def _qgcn_forward_impl(norm_adj, q0, emb01, emb02, alphas, *,
                       n_layers, user_num, force_tiled=False):
    n = norm_adj.shape[0]
    d = emb01.shape[1]
    np_ = _round_up(n, _LANE)    # pad N to a lane multiple (zero rows/cols inert)
    dp = _round_up(d, _LANE)     # pad D to 128 -> lane-dense (unmasked) stores

    budget, limit = _vmem_params()

    m_stack = jnp.stack([_pad2(norm_adj, np_, np_),
                         _pad2(q0, np_, np_)]).astype(jnp.bfloat16)
    e_stack = jnp.stack([_pad2(emb01, np_, dp),
                         _pad2(emb02, np_, dp)]).astype(jnp.float32)
    alphas_half = (0.5 * alphas).astype(jnp.float32)

    # fused-path VMEM estimate: single-buffered M scratch + double-buffered E
    # + double-buffered per-chain output + bf16 layer-state scratch
    fused_bytes = (np_ * np_ * 2 + 2 * np_ * dp * 4
                   + 2 * np_ * dp * 4 + np_ * dp * 2)
    if (not force_tiled) and fused_bytes <= budget:
        out = _fused_forward(m_stack, e_stack, alphas_half, n_layers, limit)
    else:
        out = _tiled_forward(m_stack, e_stack, alphas_half, n_layers,
                             budget, limit)

    out = out[:n, :d]
    return out[:user_num], out[user_num:]


qgcn_forward = jax.jit(_qgcn_forward_impl,
                       static_argnames=("n_layers", "user_num", "force_tiled"))


# ---------------------------------------------------------------------------
# Deterministic synthetic setup (replaces dataset / checkpoint; init-time glue)
# ---------------------------------------------------------------------------
def xavier_uniform(key, shape):
    fan_in, fan_out = shape
    bound = jnp.sqrt(6.0 / (fan_in + fan_out))
    return jax.random.uniform(key, shape, jnp.float32, -bound, bound)


def build_graph_matrices(key, user_num, item_num, density=0.08):
    r = jax.random.bernoulli(key, density, (user_num, item_num)).astype(jnp.float32)
    n = user_num + item_num
    a = jnp.zeros((n, n), jnp.float32)
    a = a.at[:user_num, user_num:].set(r)
    a = a.at[user_num:, :user_num].set(r.T)
    deg = a.sum(axis=1)
    d_inv_sqrt = jnp.where(deg == 0, 0.0,
                           1.0 / jnp.sqrt(jnp.where(deg == 0, 1.0, deg)))
    a_hat = d_inv_sqrt[:, None] * a * d_inv_sqrt[None, :]
    # Q0 = sum_i pp[:, i] pp[:, i]^T = pp @ pp.T with pp = eigvecs(A_hat)**2
    _, p = jnp.linalg.eigh(a_hat)
    pp = p ** 2
    q0 = pp @ pp.T
    return a_hat.astype(jnp.float32), q0.astype(jnp.float32)


def reference_forward(a_hat, q0, e01, e02, alphas, n_layers, user_num):
    hp = jax.lax.Precision.HIGHEST
    t1, x = [alphas[0] * e01], e01
    for l in range(n_layers):
        x = jnp.matmul(a_hat, x, precision=hp)
        t1.append(alphas[l + 1] * x)
    t2, y = [alphas[0] * e02], e02
    for l in range(n_layers):
        y = jnp.matmul(q0, y, precision=hp)
        t2.append(alphas[l + 1] * y)
    out = sum((a + b) * 0.5 for a, b in zip(t1, t2))
    return out[:user_num], out[user_num:]


def _run_case(key, user_num, item_num, emb_dim, n_layers, check_tiled):
    k_graph, k_u1, k_i1, k_u2, k_i2 = jax.random.split(key, 5)
    a_hat, q0 = build_graph_matrices(k_graph, user_num, item_num)
    e01 = jnp.concatenate([xavier_uniform(k_u1, (user_num, emb_dim)),
                           xavier_uniform(k_i1, (item_num, emb_dim))], axis=0)
    e02 = jnp.concatenate([xavier_uniform(k_u2, (user_num, emb_dim)),
                           xavier_uniform(k_i2, (item_num, emb_dim))], axis=0)
    alphas = jnp.ones((n_layers + 1,), jnp.float32) / (n_layers + 1)

    ref_u, ref_i = reference_forward(a_hat, q0, e01, e02, alphas,
                                     n_layers, user_num)

    # primary (auto-selected: fused for these sizes)
    u, i = qgcn_forward(a_hat, q0, e01, e02, alphas,
                        n_layers=n_layers, user_num=user_num)
    jax.block_until_ready((u, i))
    assert u.shape == (user_num, emb_dim) and i.shape == (item_num, emb_dim)
    # bf16 matmul operands -> loosened tolerance vs f32 reference
    assert jnp.allclose(u, ref_u, atol=5e-3, rtol=5e-2)
    assert jnp.allclose(i, ref_i, atol=5e-3, rtol=5e-2)

    if check_tiled:
        u2, i2 = qgcn_forward(a_hat, q0, e01, e02, alphas,
                              n_layers=n_layers, user_num=user_num,
                              force_tiled=True)
        jax.block_until_ready((u2, i2))
        assert jnp.allclose(u2, ref_u, atol=5e-3, rtol=5e-2)
        assert jnp.allclose(i2, ref_i, atol=5e-3, rtol=5e-2)


if __name__ == "__main__":
    root = jax.random.PRNGKey(0)
    k_a, k_b = jax.random.split(root)

    # Config A: module-like demo sizes (N = 48+80 = 128, D = 64, L = 2).
    _run_case(k_a, user_num=48, item_num=80, emb_dim=64, n_layers=2,
              check_tiled=True)

    # Config B: unaligned N (380 -> padded 384) and D (96 -> 128), L = 3;
    # exercises padding and the multi-tile streaming path (grid 2x3x3).
    _run_case(k_b, user_num=150, item_num=230, emb_dim=96, n_layers=3,
              check_tiled=True)

    print("KERNEL_OK")
</pallas_src>

<mosaic_0001>
module attributes {stable_mosaic.version = 11 : i64} {
  func.func @_fused_kernel(%arg0: i32, %arg1: memref<3xf32, #tpu.memory_space<smem>>, %arg2: memref<1x128x128xf32, #tpu.memory_space<vmem>>, %arg3: memref<2x128x128xbf16, #tpu.memory_space<any>>, %arg4: memref<1x128x128xf32, #tpu.memory_space<vmem>>, %arg5: memref<128x128xbf16, #tpu.memory_space<vmem>>, %arg6: memref<128x128xbf16, #tpu.memory_space<vmem>>, %arg7: memref<1x!tpu.dma_semaphore, #tpu.memory_space<semaphore_mem>>) attributes {dimension_semantics = [#tpu.dimension_semantics<parallel>], iteration_bounds = array<i64: 2>, scalar_prefetch = 1 : i64, scratch_operands = 3 : i64, tpu.core_type = #tpu.core_type<tc>, window_params = [{transform_indices = @transform_0, window_bounds = array<i64: 1, 128, 128>}, {}, {transform_indices = @transform_2, window_bounds = array<i64: 1, 128, 128>}]} {
    %c0_i32 = arith.constant 0 : i32
    %c0_i32_0 = arith.constant 0 : i32
    %c0_i32_1 = arith.constant 0 : i32
    %0 = tpu.memref_slice %arg3[%arg0, %c0_i32_0, %c0_i32_1] : memref<2x128x128xbf16, #tpu.memory_space<any>> -> memref<1x128x128xbf16, #tpu.memory_space<any>>
    %1 = tpu.memref_squeeze %0 : memref<1x128x128xbf16, #tpu.memory_space<any>> -> memref<128x128xbf16, #tpu.memory_space<any>>
    %2 = tpu.memref_slice %arg7[%c0_i32] : memref<1x!tpu.dma_semaphore, #tpu.memory_space<semaphore_mem>> -> memref<1x!tpu.dma_semaphore, #tpu.memory_space<semaphore_mem>>
    %3 = tpu.memref_squeeze %2 : memref<1x!tpu.dma_semaphore, #tpu.memory_space<semaphore_mem>> -> memref<!tpu.dma_semaphore, #tpu.memory_space<semaphore_mem>>
    tpu.enqueue_dma source(%1 : memref<128x128xbf16, #tpu.memory_space<any>>) target(%arg5 : memref<128x128xbf16, #tpu.memory_space<vmem>>) target_semaphore(%3 : memref<!tpu.dma_semaphore, #tpu.memory_space<semaphore_mem>>)
    %c0 = arith.constant 0 : index
    %c0_2 = arith.constant 0 : index
    %c0_3 = arith.constant 0 : index
    %4 = vector.load %arg2[%c0, %c0_2, %c0_3] : memref<1x128x128xf32, #tpu.memory_space<vmem>>, vector<1x128x128xf32>
    %5 = vector.shape_cast %4 : vector<1x128x128xf32> to vector<128x128xf32>
    %c0_4 = arith.constant 0 : index
    %6 = memref.load %arg1[%c0_4] : memref<3xf32, #tpu.memory_space<smem>>
    %7 = vector.broadcast %6 : f32 to vector<128x128xf32>
    %8 = arith.mulf %7, %5 : vector<128x128xf32>
    %c0_5 = arith.constant 0 : index
    %c0_6 = arith.constant 0 : index
    %c0_7 = arith.constant 0 : index
    %9 = vector.load %arg4[%c0_5, %c0_6, %c0_7] : memref<1x128x128xf32, #tpu.memory_space<vmem>>, vector<1x128x128xf32>
    %10 = vector.shape_cast %9 : vector<1x128x128xf32> to vector<128x128xf32>
    %11 = vector.shape_cast %8 : vector<128x128xf32> to vector<1x128x128xf32>
    tpu.vector_store %arg4[%c0_5, %c0_6, %c0_7], %11 {strides = array<i32>} : memref<1x128x128xf32, #tpu.memory_space<vmem>>, vector<1x128x128xf32>,
    %12 = arith.truncf %5 : vector<128x128xf32> to vector<128x128xbf16>
    %c0_8 = arith.constant 0 : index
    %c0_9 = arith.constant 0 : index
    %13 = vector.load %arg6[%c0_8, %c0_9] : memref<128x128xbf16, #tpu.memory_space<vmem>>, vector<128x128xbf16>
    tpu.vector_store %arg6[%c0_8, %c0_9], %12 {strides = array<i32>} : memref<128x128xbf16, #tpu.memory_space<vmem>>, vector<128x128xbf16>,
    %c0_i32_10 = arith.constant 0 : i32
    %c0_i32_11 = arith.constant 0 : i32
    %c0_i32_12 = arith.constant 0 : i32
    %14 = tpu.memref_slice %arg3[%arg0, %c0_i32_11, %c0_i32_12] : memref<2x128x128xbf16, #tpu.memory_space<any>> -> memref<1x128x128xbf16, #tpu.memory_space<any>>
    %15 = tpu.memref_squeeze %14 : memref<1x128x128xbf16, #tpu.memory_space<any>> -> memref<128x128xbf16, #tpu.memory_space<any>>
    %16 = tpu.memref_slice %arg7[%c0_i32_10] : memref<1x!tpu.dma_semaphore, #tpu.memory_space<semaphore_mem>> -> memref<1x!tpu.dma_semaphore, #tpu.memory_space<semaphore_mem>>
    %17 = tpu.memref_squeeze %16 : memref<1x!tpu.dma_semaphore, #tpu.memory_space<semaphore_mem>> -> memref<!tpu.dma_semaphore, #tpu.memory_space<semaphore_mem>>
    tpu.wait_dma2 semaphore(%17 : memref<!tpu.dma_semaphore, #tpu.memory_space<semaphore_mem>>) src(%15 : memref<128x128xbf16, #tpu.memory_space<any>>) dst(%arg5 : memref<128x128xbf16, #tpu.memory_space<vmem>>)
    %c0_13 = arith.constant 0 : index
    %c0_14 = arith.constant 0 : index
    %18 = vector.load %arg5[%c0_13, %c0_14] : memref<128x128xbf16, #tpu.memory_space<vmem>>, vector<128x128xbf16>
    %c0_15 = arith.constant 0 : index
    %c0_16 = arith.constant 0 : index
    %19 = vector.load %arg6[%c0_15, %c0_16] : memref<128x128xbf16, #tpu.memory_space<vmem>>, vector<128x128xbf16>
    %cst = arith.constant dense<0.000000e+00> : vector<128x128xf32>
    %20 = tpu.matmul %18, %19, %cst {dimension_numbers = #tpu.dot_dimension_numbers<[1], [0], [0], [1], [0, 0, 1, 1], [], []>} : vector<128x128xbf16>, vector<128x128xbf16>, vector<128x128xf32> -> vector<128x128xf32>
    %c0_17 = arith.constant 0 : index
    %c0_18 = arith.constant 0 : index
    %c0_19 = arith.constant 0 : index
    %21 = vector.load %arg4[%c0_17, %c0_18, %c0_19] : memref<1x128x128xf32, #tpu.memory_space<vmem>>, vector<1x128x128xf32>
    %22 = vector.shape_cast %21 : vector<1x128x128xf32> to vector<128x128xf32>
    %c1 = arith.constant 1 : index
    %23 = memref.load %arg1[%c1] : memref<3xf32, #tpu.memory_space<smem>>
    %24 = vector.broadcast %23 : f32 to vector<128x128xf32>
    %25 = arith.mulf %24, %20 : vector<128x128xf32>
    %26 = arith.addf %22, %25 : vector<128x128xf32>
    %c0_20 = arith.constant 0 : index
    %c0_21 = arith.constant 0 : index
    %c0_22 = arith.constant 0 : index
    %27 = vector.load %arg4[%c0_20, %c0_21, %c0_22] : memref<1x128x128xf32, #tpu.memory_space<vmem>>, vector<1x128x128xf32>
    %28 = vector.shape_cast %27 : vector<1x128x128xf32> to vector<128x128xf32>
    %29 = vector.shape_cast %26 : vector<128x128xf32> to vector<1x128x128xf32>
    tpu.vector_store %arg4[%c0_20, %c0_21, %c0_22], %29 {strides = array<i32>} : memref<1x128x128xf32, #tpu.memory_space<vmem>>, vector<1x128x128xf32>,
    %30 = arith.truncf %20 : vector<128x128xf32> to vector<128x128xbf16>
    %c0_23 = arith.constant 0 : index
    %c0_24 = arith.constant 0 : index
    %31 = vector.load %arg6[%c0_23, %c0_24] : memref<128x128xbf16, #tpu.memory_space<vmem>>, vector<128x128xbf16>
    tpu.vector_store %arg6[%c0_23, %c0_24], %30 {strides = array<i32>} : memref<128x128xbf16, #tpu.memory_space<vmem>>, vector<128x128xbf16>,
    %c0_25 = arith.constant 0 : index
    %c0_26 = arith.constant 0 : index
    %32 = vector.load %arg6[%c0_25, %c0_26] : memref<128x128xbf16, #tpu.memory_space<vmem>>, vector<128x128xbf16>
    %cst_27 = arith.constant dense<0.000000e+00> : vector<128x128xf32>
    %33 = tpu.matmul %18, %32, %cst_27 {dimension_numbers = #tpu.dot_dimension_numbers<[1], [0], [0], [1], [0, 0, 1, 1], [], []>} : vector<128x128xbf16>, vector<128x128xbf16>, vector<128x128xf32> -> vector<128x128xf32>
    %c0_28 = arith.constant 0 : index
    %c0_29 = arith.constant 0 : index
    %c0_30 = arith.constant 0 : index
    %34 = vector.load %arg4[%c0_28, %c0_29, %c0_30] : memref<1x128x128xf32, #tpu.memory_space<vmem>>, vector<1x128x128xf32>
    %35 = vector.shape_cast %34 : vector<1x128x128xf32> to vector<128x128xf32>
    %c2 = arith.constant 2 : index
    %36 = memref.load %arg1[%c2] : memref<3xf32, #tpu.memory_space<smem>>
    %37 = vector.broadcast %36 : f32 to vector<128x128xf32>
    %38 = arith.mulf %37, %33 : vector<128x128xf32>
    %39 = arith.addf %35, %38 : vector<128x128xf32>
    %c0_31 = arith.constant 0 : index
    %c0_32 = arith.constant 0 : index
    %c0_33 = arith.constant 0 : index
    %40 = vector.load %arg4[%c0_31, %c0_32, %c0_33] : memref<1x128x128xf32, #tpu.memory_space<vmem>>, vector<1x128x128xf32>
    %41 = vector.shape_cast %40 : vector<1x128x128xf32> to vector<128x128xf32>
    %42 = vector.shape_cast %39 : vector<128x128xf32> to vector<1x128x128xf32>
    tpu.vector_store %arg4[%c0_31, %c0_32, %c0_33], %42 {strides = array<i32>} : memref<1x128x128xf32, #tpu.memory_space<vmem>>, vector<1x128x128xf32>,
    %43 = arith.truncf %33 : vector<128x128xf32> to vector<128x128xbf16>
    %c0_34 = arith.constant 0 : index
    %c0_35 = arith.constant 0 : index
    %44 = vector.load %arg6[%c0_34, %c0_35] : memref<128x128xbf16, #tpu.memory_space<vmem>>, vector<128x128xbf16>
    tpu.vector_store %arg6[%c0_34, %c0_35], %43 {strides = array<i32>} : memref<128x128xbf16, #tpu.memory_space<vmem>>, vector<128x128xbf16>,
    return
  }
  func.func @transform_0(%arg0: i32, %arg1: memref<3xf32, #tpu.memory_space<smem>>) -> (i32, i32, i32) {
    %c0_i32 = arith.constant 0 : i32
    %c0_i32_0 = arith.constant 0 : i32
    %c0_i32_1 = arith.constant 0 : i32
    return %arg0, %c0_i32, %c0_i32_0 : i32, i32, i32
  }
  func.func @transform_2(%arg0: i32, %arg1: memref<3xf32, #tpu.memory_space<smem>>) -> (i32, i32, i32) {
    %c0_i32 = arith.constant 0 : i32
    %c0_i32_0 = arith.constant 0 : i32
    %c0_i32_1 = arith.constant 0 : i32
    return %arg0, %c0_i32, %c0_i32_0 : i32, i32, i32
  }
}

</mosaic_0001>

<llo_original>
// kernel: _qgcn_forward_impl.1
$region0: #{_qgcn_forward_impl.1}
  #allocation0 [shape = 'u32[]', space=smem, size = 0x4, offset = 0x4, fixed_abs, tag = 'smem constant byte address 0x4 - core index']
  #allocation1 [shape = 'u32[144,128]{1,0:T(1,128)}', space=vmem, size = 0x12000, scoped, tag = 'internal scratch']
  #allocation2 [shape = 'bf16[128,128]{1,0:T(16,128)(2,1)}', space=vmem, size = 0x8000, scoped, tag = 'scratch operand']
  #allocation3 [shape = 'bf16[128,128]{1,0:T(16,128)(2,1)}', space=vmem, size = 0x8000, scoped, tag = 'scratch operand']
  #allocation4 [shape = 's32[1]{0}', space=sflag, size = 0x4, scoped, tag = 'scratch operand']
  #allocation5 [shape = 's32[1]{0}', space=sflag, size = 0x4, scoped, tag = 'scoped memory for _qgcn_forward_impl.1']
  #allocation6 [shape = 'u8[512]{0}', space=smem, size = 0x200, scoped, tag = 'prefetched SMEM operand 0']
  #allocation7 [shape = 's32[]', space=sflag, size = 0x4, offset = 0, fixed_abs, tag = 'sflag constant byte address 0x0 - dummy sync flag']
  %s0 = inlined_call_operand.vmem [shape: f32[3], index: 0, kind: input, shape index: {}]
  %s1 = inlined_call_operand.vmem [shape: f32[2,128,128], index: 1, kind: input, shape index: {}]
  %s2 = inlined_call_operand.vmem [shape: bf16[2,128,128], index: 2, kind: input, shape index: {}]
  %s3 = inlined_call_operand.vmem [shape: f32[2,128,128], index: 3, kind: output, shape index: {}]
  %s4 = sld [smem:[#allocation0]]
  $region71: #{_qgcn_forward_impl.1} parent=0
    _
  %s6 = ssub.s32 1, %s4
  %s7 = scalar_select 0, %s6, %s4
  %s8 = sshll.u32 %s0, 4
  %s9 = int_to_ptr.vmem [resolvable:$true] %s8
  %11 = dma.vmem_to_smem %s9, 16, [#allocation6], [#allocation5]
  %12 = dma.done [#allocation5], 16
  %13 = sfence
  loop: start=0, step=1, limit=4
  $region2: #{_qgcn_forward_impl.1} parent=0 // loop_pre_header
    _
  $region3: #{_qgcn_forward_impl.1} parent=0 // loop_header
    %s15 = sphi 0, %s19
    %p16 = scmp.ge.s32.totalorder %s15, 4
    %s25 = sphi 0, %s27
    %s28 = sphi 0, %s25
    %s29 = sphi 0, %s28
    %s45 = sphi 0, %s29
    %s51 = sphi 0, %s53
    %s54 = sphi 0, %s51
    %s55 = sphi 0, %s54
    %s71 = sphi 0, %s55
  $region4: #{_qgcn_forward_impl.1} parent=0 // loop_header_branch
    %18 = sbr.rel (%p16) target = $region8
  $region5: #{_qgcn_forward_impl.1} parent=0 // loop_body
    %s20 = ssub.s32 %s15, 1
    %s21 = ssub.s32 %s15, 2
    %s22 = sadd.s32 %s15, 1
    %s23 = ssub.s32 %s15, %s22
    %p24 = scmp.eq.s32.totalorder %s23, 0
    %s26 = sadd.s32 %s25, 1
    %s27 = scalar_select %p24, %s25, %s26
    %p30 = pneg %p24
    %p31 = scmp.eq.s32.totalorder %s15, 1
    %p32 = por %p30, %p31
    %p33 = scmp.ne.s32.totalorder %s25, %s28
    %p34 = scmp.eq.s32.totalorder %s15, 0
    %p35 = por %p33, %p34
    %p36 = scmp.ne.s32.totalorder %s25, %s28
    %p37 = scmp.eq.s32.totalorder %s20, 1
    %p38 = por %p36, %p37
    %p39 = scmp.ne.s32.totalorder %s28, %s29
    %p40 = scmp.eq.s32.totalorder %s20, 0
    %p41 = por %p39, %p40
    %p42 = scmp.ne.s32.totalorder %s28, %s29
    %p43 = scmp.eq.s32.totalorder %s21, 1
    %p44 = por %p42, %p43
    %p46 = scmp.ne.s32.totalorder %s29, %s45
    %p47 = scmp.eq.s32.totalorder %s21, 0
    %p48 = por %p46, %p47
    %s49 = ssub.s32 %s15, %s22
    %p50 = scmp.eq.s32.totalorder %s49, 0
    %s52 = sadd.s32 %s51, 1
    %s53 = scalar_select %p50, %s51, %s52
    %p56 = pneg %p50
    %p57 = scmp.eq.s32.totalorder %s15, 1
    %p58 = por %p56, %p57
    %p59 = scmp.ne.s32.totalorder %s51, %s54
    %p60 = scmp.eq.s32.totalorder %s15, 0
    %p61 = por %p59, %p60
    %p62 = scmp.ne.s32.totalorder %s51, %s54
    %p63 = scmp.eq.s32.totalorder %s20, 1
    %p64 = por %p62, %p63
    %p65 = scmp.ne.s32.totalorder %s54, %s55
    %p66 = scmp.eq.s32.totalorder %s20, 0
    %p67 = por %p65, %p66
    %p68 = scmp.ne.s32.totalorder %s54, %s55
    %p69 = scmp.eq.s32.totalorder %s21, 1
    %p70 = por %p68, %p69
    %p72 = scmp.ne.s32.totalorder %s55, %s71
    %p73 = scmp.eq.s32.totalorder %s21, 0
    %p74 = por %p72, %p73
    %p75 = scmp.le.s32.totalorder 1, %s15
    %p76 = scmp.lt.s32.totalorder %s15, 3
    %p77 = pnand %p75, %p76
    %p78 = pneg %p77
    // Predicated region
    $region9: #{_qgcn_forward_impl.1} parent=5 // pred_check
      _
    $region10: #{_qgcn_forward_impl.1} parent=5 // pred_check_branch
      %80 = sbr.rel (%p77) target = $region12
    $region11: #{_qgcn_forward_impl.1} parent=5 // pred_region
      %s81 = ssub.s32 %s15, 1
    $region12: #{_qgcn_forward_impl.1} parent=5 // pred_fallthru
      _
    %p82 = scmp.lt.s32.totalorder %s15, 2
    // Predicated region
    $region13: #{_qgcn_forward_impl.1} parent=5 // pred_check
      %p83 = pneg %p82
    $region14: #{_qgcn_forward_impl.1} parent=5 // pred_check_branch
      %85 = sbr.rel (%p83) target = $region16
    $region15: #{_qgcn_forward_impl.1} parent=5 // pred_region
      // Predicated region
      $region17: #{_qgcn_forward_impl.1} parent=15 // pred_check
        %p86 = pneg %p35
      $region18: #{_qgcn_forward_impl.1} parent=15 // pred_check_branch
        %88 = sbr.rel (%p86) target = $region20
      $region19: #{_qgcn_forward_impl.1} parent=15 // pred_region
        %p89 = scmp.lt.s32.totalorder %s15, 1
        %s90 = scalar_select %p89, %s15, 1
        %s91 = smul.addr %s90, 16
        %s92 = smul.addr %s91, 8
        %s93 = scalar_lea.vmem %s1, %s92
      $region20: #{_qgcn_forward_impl.1} parent=15 // pred_fallthru
        _
    $region16: #{_qgcn_forward_impl.1} parent=5 // pred_fallthru
      _
    %p94 = scmp.le.s32.totalorder 1, %s15
    %p95 = scmp.lt.s32.totalorder %s15, 3
    %p96 = pnand %p94, %p95
    %p97 = pneg %p96
    // Predicated region
    $region21: #{_qgcn_forward_impl.1} parent=5 // pred_check
      _
    $region22: #{_qgcn_forward_impl.1} parent=5 // pred_check_branch
      %99 = sbr.rel (%p96) target = $region24
    $region23: #{_qgcn_forward_impl.1} parent=5 // pred_region
      %s100 = ssub.s32 %s15, 1
      %p101 = scmp.lt.s32.totalorder %s20, 1
      %s102 = scalar_select %p101, %s20, 1
      %s103 = smul.addr %s102, 16
      %s104 = smul.addr %s103, 8
      %s105 = scalar_lea.vmem %s1, %s104
      %p106 = pneg %p41
      %p107 = pneg %p38
      %p108 = pneg %p67
      %p109 = pneg %p64
      %p110 = scmp.lt.s32.totalorder %s20, 1
      %s111 = scalar_select %p110, %s20, 1
      %s112 = smul.addr %s111, 16
      %s113 = smul.addr %s112, 8
      %s114 = scalar_lea.vmem %s3, %s113
      %p115 = scmp.lt.s32.totalorder %s20, 1
      %s116 = scalar_select %p115, %s20, 1
      %s117 = smul.addr %s116, 16
      %s118 = smul.addr %s117, 8
      %s119 = scalar_lea.vmem %s1, %s118
      %p120 = scmp.lt.s32.totalorder %s20, 1
      %s121 = scalar_select %p120, %s20, 1
      %s122 = smul.addr %s121, 16
      %s123 = smul.addr %s122, 8
      %s124 = scalar_lea.vmem %s3, %s123
      %s126 = smul.u32 %s20, 16
      %s127 = smul.addr %s126, 4
      %s128 = scalar_lea.vmem %s2, %s127
      %p130 = scmp.lt.u32.totalorder 64, 8
      %p131 = pneg %p130
      // Predicated region
      $region25: #{_qgcn_forward_impl.1} parent=23 // pred_check
        _
      $region26: #{_qgcn_forward_impl.1} parent=23 // pred_check_branch
        %133 = sbr.rel (%p130) target = $region28
      $region27: #{_qgcn_forward_impl.1} parent=23 // pred_region
        %s148 = sand.u32 64, 7
        %p149 = scmp.eq.s32.totalorder %s148, 0
        // Predicated region
        $region40: #{_qgcn_forward_impl.1} parent=27 // pred_check
          %p150 = pneg %p149
        $region41: #{_qgcn_forward_impl.1} parent=27 // pred_check_branch
          %152 = sbr.rel (%p150) target = $region43
        $region42: #{_qgcn_forward_impl.1} parent=27 // pred_region
          loop: start=0, step=1, limit=1
          $region44: #{_qgcn_forward_impl.1} parent=42 // loop_pre_header
            _
          $region45: #{_qgcn_forward_impl.1} parent=42 // loop_header
            %s154 = sphi 0, %s158
            %p155 = scmp.ge.s32.totalorder %s154, 1
            %s159 = sphi %s128, %s128
            %s160 = sphi [#allocation2], [#allocation2]
          $region46: #{_qgcn_forward_impl.1} parent=42 // loop_header_branch
            %157 = sbr.rel (%p155) target = $region50
          $region47: #{_qgcn_forward_impl.1} parent=42 // loop_body
            %v161 = vld [vmem:[%s159] sm:$0xff]
            %162 = vst [vmem:[%s160] sm:$0xff] %v161
            %v163 = vld [vmem:[%s159 + $0x8] sm:$0xff]
            %164 = vst [vmem:[%s160 + $0x8] sm:$0xff] %v163
            %v165 = vld [vmem:[%s159 + $0x10] sm:$0xff]
            %166 = vst [vmem:[%s160 + $0x10] sm:$0xff] %v165
            %v167 = vld [vmem:[%s159 + $0x18] sm:$0xff]
            %168 = vst [vmem:[%s160 + $0x18] sm:$0xff] %v167
            %v169 = vld [vmem:[%s159 + $0x20] sm:$0xff]
            %170 = vst [vmem:[%s160 + $0x20] sm:$0xff] %v169
            %v171 = vld [vmem:[%s159 + $0x28] sm:$0xff]
            %172 = vst [vmem:[%s160 + $0x28] sm:$0xff] %v171
            %v173 = vld [vmem:[%s159 + $0x30] sm:$0xff]
            %174 = vst [vmem:[%s160 + $0x30] sm:$0xff] %v173
            %v175 = vld [vmem:[%s159 + $0x38] sm:$0xff]
            %176 = vst [vmem:[%s160 + $0x38] sm:$0xff] %v175
          $region48: #{_qgcn_forward_impl.1} parent=42 // loop_footer
            %s158 = sadd.s32 1, %s154
          $region49: #{_qgcn_forward_impl.1} parent=42 // loop_footer_branch
            %153 = sbr.rel target = $region45
          $region50: #{_qgcn_forward_impl.1} parent=42 // loop_exit
            _
        $region43: #{_qgcn_forward_impl.1} parent=27 // pred_fallthru
          _
        %p177 = pneg %p149
        // Predicated region
        $region51: #{_qgcn_forward_impl.1} parent=27 // pred_check
          _
        $region52: #{_qgcn_forward_impl.1} parent=27 // pred_check_branch
          %179 = sbr.rel (%p149) target = $region54
        $region53: #{_qgcn_forward_impl.1} parent=27 // pred_region
          %s180 = sand.u32 64, 7
        $region54: #{_qgcn_forward_impl.1} parent=27 // pred_fallthru
          _
      $region28: #{_qgcn_forward_impl.1} parent=23 // pred_fallthru
        _
      // Predicated region
      $region29: #{_qgcn_forward_impl.1} parent=23 // pred_check
        %p134 = pneg %p130
      $region30: #{_qgcn_forward_impl.1} parent=23 // pred_check_branch
        %136 = sbr.rel (%p134) target = $region32
      $region31: #{_qgcn_forward_impl.1} parent=23 // pred_region
        %s137 = sshllo.u32 0, 64
        loop: start=0, step=1, limit=1
        $region33: #{_qgcn_forward_impl.1} parent=31 // loop_pre_header
          _
        $region34: #{_qgcn_forward_impl.1} parent=31 // loop_header
          %s139 = sphi 0, %s143
          %p140 = scmp.ge.s32.totalorder %s139, 1
          %s144 = sphi %s128, %s128
          %s145 = sphi [#allocation2], [#allocation2]
        $region35: #{_qgcn_forward_impl.1} parent=31 // loop_header_branch
          %142 = sbr.rel (%p140) target = $region39
        $region36: #{_qgcn_forward_impl.1} parent=31 // loop_body
          %v146 = vld [vmem:[%s144] sm:%s137]
          %147 = vst [vmem:[%s145] sm:%s137] %v146
        $region37: #{_qgcn_forward_impl.1} parent=31 // loop_footer
          %s143 = sadd.s32 1, %s139
        $region38: #{_qgcn_forward_impl.1} parent=31 // loop_footer_branch
          %138 = sbr.rel target = $region34
        $region39: #{_qgcn_forward_impl.1} parent=31 // loop_exit
          _
      $region32: #{_qgcn_forward_impl.1} parent=23 // pred_fallthru
        _
      // Predicated region
      $region55: #{_qgcn_forward_impl.1} parent=23 // pred_check
        _
      $region56: #{_qgcn_forward_impl.1} parent=23 // pred_check_branch
        %183 = sbr.rel (0) target = $region58
      $region57: #{_qgcn_forward_impl.1} parent=23 // pred_region
        %184 = vsyncadd [#allocation4], 1024
      $region58: #{_qgcn_forward_impl.1} parent=23 // pred_fallthru
        _
      %v185 = vld [vmem:[%s119] sm:$0xff]
      %v186 = vld [vmem:[%s119 + $0x8] sm:$0xff]
      %v187 = vld [vmem:[%s119 + $0x10] sm:$0xff]
      %v188 = vld [vmem:[%s119 + $0x18] sm:$0xff]
      %v189 = vld [vmem:[%s119 + $0x20] sm:$0xff]
      %v190 = vld [vmem:[%s119 + $0x28] sm:$0xff]
      %v191 = vld [vmem:[%s119 + $0x30] sm:$0xff]
      %v192 = vld [vmem:[%s119 + $0x38] sm:$0xff]
      %v193 = vld [vmem:[%s119 + $0x40] sm:$0xff]
      %v194 = vld [vmem:[%s119 + $0x48] sm:$0xff]
      %v195 = vld [vmem:[%s119 + $0x50] sm:$0xff]
      %v196 = vld [vmem:[%s119 + $0x58] sm:$0xff]
      %v197 = vld [vmem:[%s119 + $0x60] sm:$0xff]
      %v198 = vld [vmem:[%s119 + $0x68] sm:$0xff]
      %v199 = vld [vmem:[%s119 + $0x70] sm:$0xff]
      %v200 = vld [vmem:[%s119 + $0x78] sm:$0xff]
      %s201 = sld [smem:[#allocation6]]
      %v202 = vstv %s201
      %v203 = vmul.f32 %v202, %v185
      %v204 = vmul.f32 %v202, %v186
      %v205 = vmul.f32 %v202, %v187
      %v206 = vmul.f32 %v202, %v188
      %v207 = vmul.f32 %v202, %v189
      %v208 = vmul.f32 %v202, %v190
      %v209 = vmul.f32 %v202, %v191
      %v210 = vmul.f32 %v202, %v192
      %v211 = vmul.f32 %v202, %v193
      %v212 = vmul.f32 %v202, %v194
      %v213 = vmul.f32 %v202, %v195
      %v214 = vmul.f32 %v202, %v196
      %v215 = vmul.f32 %v202, %v197
      %v216 = vmul.f32 %v202, %v198
      %v217 = vmul.f32 %v202, %v199
      %v218 = vmul.f32 %v202, %v200
      %219 = vst [vmem:[%s124] sm:$0xff] %v203
      %220 = vst [vmem:[%s124 + $0x8] sm:$0xff] %v204
      %221 = vst [vmem:[%s124 + $0x10] sm:$0xff] %v205
      %222 = vst [vmem:[%s124 + $0x18] sm:$0xff] %v206
      %223 = vst [vmem:[%s124 + $0x20] sm:$0xff] %v207
      %224 = vst [vmem:[%s124 + $0x28] sm:$0xff] %v208
      %225 = vst [vmem:[%s124 + $0x30] sm:$0xff] %v209
      %226 = vst [vmem:[%s124 + $0x38] sm:$0xff] %v210
      %227 = vst [vmem:[%s124 + $0x40] sm:$0xff] %v211
      %228 = vst [vmem:[%s124 + $0x48] sm:$0xff] %v212
      %229 = vst [vmem:[%s124 + $0x50] sm:$0xff] %v213
      %230 = vst [vmem:[%s124 + $0x58] sm:$0xff] %v214
      %231 = vst [vmem:[%s124 + $0x60] sm:$0xff] %v215
      %232 = vst [vmem:[%s124 + $0x68] sm:$0xff] %v216
      %233 = vst [vmem:[%s124 + $0x70] sm:$0xff] %v217
      %234 = vst [vmem:[%s124 + $0x78] sm:$0xff] %v218
      %v235 = vpack.c.bf16 %v186, %v185
      %v236 = vpack.c.bf16 %v188, %v187
      %v237 = vpack.c.bf16 %v190, %v189
      %v238 = vpack.c.bf16 %v192, %v191
      %v239 = vpack.c.bf16 %v194, %v193
      %v240 = vpack.c.bf16 %v196, %v195
      %v241 = vpack.c.bf16 %v198, %v197
      %v242 = vpack.c.bf16 %v200, %v199
      %243 = vst [vmem:[#allocation3] sm:$0xff] %v235
      %244 = vst [vmem:[#allocation3 + $0x8] sm:$0xff] %v236
      %245 = vst [vmem:[#allocation3 + $0x10] sm:$0xff] %v237
      %246 = vst [vmem:[#allocation3 + $0x18] sm:$0xff] %v238
      %247 = vst [vmem:[#allocation3 + $0x20] sm:$0xff] %v239
      %248 = vst [vmem:[#allocation3 + $0x28] sm:$0xff] %v240
      %249 = vst [vmem:[#allocation3 + $0x30] sm:$0xff] %v241
      %250 = vst [vmem:[#allocation3 + $0x38] sm:$0xff] %v242
      %s251 = smul.u32 4, 16
      %s252 = smul.u32 %s251, 1
      %s253 = sshll.u32 %s252, 4
      %254 = dma.done [#allocation4], %s253
      %v255 = vld [vmem:[#allocation2] sm:$0xff]
      %v256 = vld [vmem:[#allocation2 + $0x8] sm:$0xff]
      %v257 = vld [vmem:[#allocation2 + $0x10] sm:$0xff]
      %v258 = vld [vmem:[#allocation2 + $0x18] sm:$0xff]
      %v259 = vld [vmem:[#allocation2 + $0x20] sm:$0xff]
      %v260 = vld [vmem:[#allocation2 + $0x28] sm:$0xff]
      %v261 = vld [vmem:[#allocation2 + $0x30] sm:$0xff]
      %v262 = vld [vmem:[#allocation2 + $0x38] sm:$0xff]
      %v263 = vld [vmem:[#allocation3] sm:$0xff]
      %v264 = vld [vmem:[#allocation3 + $0x8] sm:$0xff]
      %v265 = vld [vmem:[#allocation3 + $0x10] sm:$0xff]
      %v266 = vld [vmem:[#allocation3 + $0x18] sm:$0xff]
      %v267 = vld [vmem:[#allocation3 + $0x20] sm:$0xff]
      %v268 = vld [vmem:[#allocation3 + $0x28] sm:$0xff]
      %v269 = vld [vmem:[#allocation3 + $0x30] sm:$0xff]
      %v270 = vld [vmem:[#allocation3 + $0x38] sm:$0xff]
      %271 = vmatprep.subr.bf16.mxu0 0
      %272 = vmatpush1.bf16.msra.mxu0 %v263
      %273 = vmatprep.subr.bf16.mxu0 0
      %274 = vmatpush1.bf16.msra.mxu0 %v264
      %275 = vmatprep.subr.bf16.mxu0 0
      %276 = vmatpush1.bf16.msra.mxu0 %v265
      %277 = vmatprep.subr.bf16.mxu0 0
      %278 = vmatpush1.bf16.msra.mxu0 %v266
      %279 = vmatprep.subr.bf16.mxu0 0
      %280 = vmatpush1.bf16.msra.mxu0 %v267
      %281 = vmatprep.subr.bf16.mxu0 0
      %282 = vmatpush1.bf16.msra.mxu0 %v268
      %283 = vmatprep.subr.bf16.mxu0 0
      %284 = vmatpush1.bf16.msra.mxu0 %v269
      %285 = vmatprep.subr.bf16.mxu0 0
      %286 = vmatpush1.bf16.msra.mxu0 %v270
      %287 = vmatprep.subr.bf16.mxu0 0
      %288 = vmatpush1.bf16.msra.mxu0 0
      %289 = vmatprep.subr.bf16.mxu0 0
      %290 = vmatpush1.bf16.msra.mxu0 0
      %291 = vmatprep.subr.bf16.mxu0 0
      %292 = vmatpush1.bf16.msra.mxu0 0
      %293 = vmatprep.subr.bf16.mxu0 0
      %294 = vmatpush1.bf16.msra.mxu0 0
      %295 = vmatprep.subr.bf16.mxu0 0
      %296 = vmatpush1.bf16.msra.mxu0 0
      %297 = vmatprep.subr.bf16.mxu0 0
      %298 = vmatpush1.bf16.msra.mxu0 0
      %299 = vmatprep.subr.bf16.mxu0 0
      %300 = vmatpush1.bf16.msra.mxu0 0
      %301 = vmatprep.subr.bf16.mxu0 0
      %302 = vmatpush1.bf16.msra.mxu0 0
      %303 = vmatprep.mubr.bf16.mxu0 0
      %304 = vmatmul.mubr.bf16.gmra.mrb[0].mxu0 %v255
      %v305 = vpop.f32.mrb[0].mxu0
      %v306 = vadd.f32 0.0, %v305
      %v307 = vpop.f32.mrb[0].mxu0
      %v308 = vpop.f32.mrb[0].mxu0
      %v309 = vadd.f32 0.0, %v308
      %v310 = vpop.f32.mrb[0].mxu0
      %311 = vmatprep.mubr.bf16.mxu0 0
      %312 = vmatmul.mubr.bf16.gmra.mrb[0].mxu0 %v256
      %v313 = vpop.f32.mrb[0].mxu0
      %v314 = vadd.f32 0.0, %v313
      %v315 = vpop.f32.mrb[0].mxu0
      %v316 = vpop.f32.mrb[0].mxu0
      %v317 = vadd.f32 0.0, %v316
      %v318 = vpop.f32.mrb[0].mxu0
      %319 = vmatprep.mubr.bf16.mxu0 0
      %320 = vmatmul.mubr.bf16.gmra.mrb[0].mxu0 %v257
      %v321 = vpop.f32.mrb[0].mxu0
      %v322 = vadd.f32 0.0, %v321
      %v323 = vpop.f32.mrb[0].mxu0
      %v324 = vpop.f32.mrb[0].mxu0
      %v325 = vadd.f32 0.0, %v324
      %v326 = vpop.f32.mrb[0].mxu0
      %327 = vmatprep.mubr.bf16.mxu0 0
      %328 = vmatmul.mubr.bf16.gmra.mrb[0].mxu0 %v258
      %v329 = vpop.f32.mrb[0].mxu0
      %v330 = vadd.f32 0.0, %v329
      %v331 = vpop.f32.mrb[0].mxu0
      %v332 = vpop.f32.mrb[0].mxu0
      %v333 = vadd.f32 0.0, %v332
      %v334 = vpop.f32.mrb[0].mxu0
      %335 = vmatprep.mubr.bf16.mxu0 0
      %336 = vmatmul.mubr.bf16.gmra.mrb[0].mxu0 %v259
      %v337 = vpop.f32.mrb[0].mxu0
      %v338 = vadd.f32 0.0, %v337
      %v339 = vpop.f32.mrb[0].mxu0
      %v340 = vpop.f32.mrb[0].mxu0
      %v341 = vadd.f32 0.0, %v340
      %v342 = vpop.f32.mrb[0].mxu0
      %343 = vmatprep.mubr.bf16.mxu0 0
      %344 = vmatmul.mubr.bf16.gmra.mrb[0].mxu0 %v260
      %v345 = vpop.f32.mrb[0].mxu0
      %v346 = vadd.f32 0.0, %v345
      %v347 = vpop.f32.mrb[0].mxu0
      %v348 = vpop.f32.mrb[0].mxu0
      %v349 = vadd.f32 0.0, %v348
      %v350 = vpop.f32.mrb[0].mxu0
      %351 = vmatprep.mubr.bf16.mxu0 0
      %352 = vmatmul.mubr.bf16.gmra.mrb[0].mxu0 %v261
      %v353 = vpop.f32.mrb[0].mxu0
      %v354 = vadd.f32 0.0, %v353
      %v355 = vpop.f32.mrb[0].mxu0
      %v356 = vpop.f32.mrb[0].mxu0
      %v357 = vadd.f32 0.0, %v356
      %v358 = vpop.f32.mrb[0].mxu0
      %359 = vmatprep.mubr.bf16.mxu0 0
      %360 = vmatmul.mubr.bf16.gmra.mrb[0].mxu0 %v262
      %v361 = vpop.f32.mrb[0].mxu0
      %v362 = vadd.f32 0.0, %v361
      %v363 = vpop.f32.mrb[0].mxu0
      %v364 = vpop.f32.mrb[0].mxu0
      %v365 = vadd.f32 0.0, %v364
      %v366 = vpop.f32.mrb[0].mxu0
      %367 = vdwg.mxu0
      %v368 = vld [vmem:[%s124] sm:$0xff]
      %v369 = vld [vmem:[%s124 + $0x8] sm:$0xff]
      %v370 = vld [vmem:[%s124 + $0x10] sm:$0xff]
      %v371 = vld [vmem:[%s124 + $0x18] sm:$0xff]
      %v372 = vld [vmem:[%s124 + $0x20] sm:$0xff]
      %v373 = vld [vmem:[%s124 + $0x28] sm:$0xff]
      %v374 = vld [vmem:[%s124 + $0x30] sm:$0xff]
      %v375 = vld [vmem:[%s124 + $0x38] sm:$0xff]
      %v376 = vld [vmem:[%s124 + $0x40] sm:$0xff]
      %v377 = vld [vmem:[%s124 + $0x48] sm:$0xff]
      %v378 = vld [vmem:[%s124 + $0x50] sm:$0xff]
      %v379 = vld [vmem:[%s124 + $0x58] sm:$0xff]
      %v380 = vld [vmem:[%s124 + $0x60] sm:$0xff]
      %v381 = vld [vmem:[%s124 + $0x68] sm:$0xff]
      %v382 = vld [vmem:[%s124 + $0x70] sm:$0xff]
      %v383 = vld [vmem:[%s124 + $0x78] sm:$0xff]
      %s384 = sld [smem:[#allocation6 + $0x1]]
      %v385 = vstv %s384
      %v386 = vmul.f32 %v385, %v306
      %v387 = vmul.f32 %v385, %v309
      %v388 = vmul.f32 %v385, %v314
      %v389 = vmul.f32 %v385, %v317
      %v390 = vmul.f32 %v385, %v322
      %v391 = vmul.f32 %v385, %v325
      %v392 = vmul.f32 %v385, %v330
      %v393 = vmul.f32 %v385, %v333
      %v394 = vmul.f32 %v385, %v338
      %v395 = vmul.f32 %v385, %v341
      %v396 = vmul.f32 %v385, %v346
      %v397 = vmul.f32 %v385, %v349
      %v398 = vmul.f32 %v385, %v354
      %v399 = vmul.f32 %v385, %v357
      %v400 = vmul.f32 %v385, %v362
      %v401 = vmul.f32 %v385, %v365
      %v402 = vadd.f32 %v368, %v386
      %v403 = vadd.f32 %v369, %v387
      %v404 = vadd.f32 %v370, %v388
      %v405 = vadd.f32 %v371, %v389
      %v406 = vadd.f32 %v372, %v390
      %v407 = vadd.f32 %v373, %v391
      %v408 = vadd.f32 %v374, %v392
      %v409 = vadd.f32 %v375, %v393
      %v410 = vadd.f32 %v376, %v394
      %v411 = vadd.f32 %v377, %v395
      %v412 = vadd.f32 %v378, %v396
      %v413 = vadd.f32 %v379, %v397
      %v414 = vadd.f32 %v380, %v398
      %v415 = vadd.f32 %v381, %v399
      %v416 = vadd.f32 %v382, %v400
      %v417 = vadd.f32 %v383, %v401
      %418 = vst [vmem:[%s124] sm:$0xff] %v402
      %419 = vst [vmem:[%s124 + $0x8] sm:$0xff] %v403
      %420 = vst [vmem:[%s124 + $0x10] sm:$0xff] %v404
      %421 = vst [vmem:[%s124 + $0x18] sm:$0xff] %v405
      %422 = vst [vmem:[%s124 + $0x20] sm:$0xff] %v406
      %423 = vst [vmem:[%s124 + $0x28] sm:$0xff] %v407
      %424 = vst [vmem:[%s124 + $0x30] sm:$0xff] %v408
      %425 = vst [vmem:[%s124 + $0x38] sm:$0xff] %v409
      %426 = vst [vmem:[%s124 + $0x40] sm:$0xff] %v410
      %427 = vst [vmem:[%s124 + $0x48] sm:$0xff] %v411
      %428 = vst [vmem:[%s124 + $0x50] sm:$0xff] %v412
      %429 = vst [vmem:[%s124 + $0x58] sm:$0xff] %v413
      %430 = vst [vmem:[%s124 + $0x60] sm:$0xff] %v414
      %431 = vst [vmem:[%s124 + $0x68] sm:$0xff] %v415
      %432 = vst [vmem:[%s124 + $0x70] sm:$0xff] %v416
      %433 = vst [vmem:[%s124 + $0x78] sm:$0xff] %v417
      %v434 = vpack.c.bf16 %v309, %v306
      %v435 = vpack.c.bf16 %v317, %v314
      %v436 = vpack.c.bf16 %v325, %v322
      %v437 = vpack.c.bf16 %v333, %v330
      %v438 = vpack.c.bf16 %v341, %v338
      %v439 = vpack.c.bf16 %v349, %v346
      %v440 = vpack.c.bf16 %v357, %v354
      %v441 = vpack.c.bf16 %v365, %v362
      %442 = vst [vmem:[#allocation3] sm:$0xff] %v434
      %443 = vst [vmem:[#allocation3 + $0x8] sm:$0xff] %v435
      %444 = vst [vmem:[#allocation3 + $0x10] sm:$0xff] %v436
      %445 = vst [vmem:[#allocation3 + $0x18] sm:$0xff] %v437
      %446 = vst [vmem:[#allocation3 + $0x20] sm:$0xff] %v438
      %447 = vst [vmem:[#allocation3 + $0x28] sm:$0xff] %v439
      %448 = vst [vmem:[#allocation3 + $0x30] sm:$0xff] %v440
      %449 = vst [vmem:[#allocation3 + $0x38] sm:$0xff] %v441
      %v450 = vld [vmem:[#allocation3] sm:$0xff]
      %v451 = vld [vmem:[#allocation3 + $0x8] sm:$0xff]
      %v452 = vld [vmem:[#allocation3 + $0x10] sm:$0xff]
      %v453 = vld [vmem:[#allocation3 + $0x18] sm:$0xff]
      %v454 = vld [vmem:[#allocation3 + $0x20] sm:$0xff]
      %v455 = vld [vmem:[#allocation3 + $0x28] sm:$0xff]
      %v456 = vld [vmem:[#allocation3 + $0x30] sm:$0xff]
      %v457 = vld [vmem:[#allocation3 + $0x38] sm:$0xff]
      %458 = vmatprep.subr.bf16.mxu0 0
      %459 = vmatpush1.bf16.msra.mxu0 %v450
      %460 = vmatprep.subr.bf16.mxu0 0
      %461 = vmatpush1.bf16.msra.mxu0 %v451
      %462 = vmatprep.subr.bf16.mxu0 0
      %463 = vmatpush1.bf16.msra.mxu0 %v452
      %464 = vmatprep.subr.bf16.mxu0 0
      %465 = vmatpush1.bf16.msra.mxu0 %v453
      %466 = vmatprep.subr.bf16.mxu0 0
      %467 = vmatpush1.bf16.msra.mxu0 %v454
      %468 = vmatprep.subr.bf16.mxu0 0
      %469 = vmatpush1.bf16.msra.mxu0 %v455
      %470 = vmatprep.subr.bf16.mxu0 0
      %471 = vmatpush1.bf16.msra.mxu0 %v456
      %472 = vmatprep.subr.bf16.mxu0 0
      %473 = vmatpush1.bf16.msra.mxu0 %v457
      %474 = vmatprep.subr.bf16.mxu0 0
      %475 = vmatpush1.bf16.msra.mxu0 0
      %476 = vmatprep.subr.bf16.mxu0 0
      %477 = vmatpush1.bf16.msra.mxu0 0
      %478 = vmatprep.subr.bf16.mxu0 0
      %479 = vmatpush1.bf16.msra.mxu0 0
      %480 = vmatprep.subr.bf16.mxu0 0
      %481 = vmatpush1.bf16.msra.mxu0 0
      %482 = vmatprep.subr.bf16.mxu0 0
      %483 = vmatpush1.bf16.msra.mxu0 0
      %484 = vmatprep.subr.bf16.mxu0 0
      %485 = vmatpush1.bf16.msra.mxu0 0
      %486 = vmatprep.subr.bf16.mxu0 0
      %487 = vmatpush1.bf16.msra.mxu0 0
      %488 = vmatprep.subr.bf16.mxu0 0
      %489 = vmatpush1.bf16.msra.mxu0 0
      %490 = vmatprep.mubr.bf16.mxu0 0
      %491 = vmatmul.mubr.bf16.gmra.mrb[0].mxu0 %v255
      %v492 = vpop.f32.mrb[0].mxu0
      %v493 = vadd.f32 0.0, %v492
      %v494 = vpop.f32.mrb[0].mxu0
      %v495 = vpop.f32.mrb[0].mxu0
      %v496 = vadd.f32 0.0, %v495
      %v497 = vpop.f32.mrb[0].mxu0
      %498 = vmatprep.mubr.bf16.mxu0 0
      %499 = vmatmul.mubr.bf16.gmra.mrb[0].mxu0 %v256
      %v500 = vpop.f32.mrb[0].mxu0
      %v501 = vadd.f32 0.0, %v500
      %v502 = vpop.f32.mrb[0].mxu0
      %v503 = vpop.f32.mrb[0].mxu0
      %v504 = vadd.f32 0.0, %v503
      %v505 = vpop.f32.mrb[0].mxu0
      %506 = vmatprep.mubr.bf16.mxu0 0
      %507 = vmatmul.mubr.bf16.gmra.mrb[0].mxu0 %v257
      %v508 = vpop.f32.mrb[0].mxu0
      %v509 = vadd.f32 0.0, %v508
      %v510 = vpop.f32.mrb[0].mxu0
      %v511 = vpop.f32.mrb[0].mxu0
      %v512 = vadd.f32 0.0, %v511
      %v513 = vpop.f32.mrb[0].mxu0
      %514 = vmatprep.mubr.bf16.mxu0 0
      %515 = vmatmul.mubr.bf16.gmra.mrb[0].mxu0 %v258
      %v516 = vpop.f32.mrb[0].mxu0
      %v517 = vadd.f32 0.0, %v516
      %v518 = vpop.f32.mrb[0].mxu0
      %v519 = vpop.f32.mrb[0].mxu0
      %v520 = vadd.f32 0.0, %v519
      %v521 = vpop.f32.mrb[0].mxu0
      %522 = vmatprep.mubr.bf16.mxu0 0
      %523 = vmatmul.mubr.bf16.gmra.mrb[0].mxu0 %v259
      %v524 = vpop.f32.mrb[0].mxu0
      %v525 = vadd.f32 0.0, %v524
      %v526 = vpop.f32.mrb[0].mxu0
      %v527 = vpop.f32.mrb[0].mxu0
      %v528 = vadd.f32 0.0, %v527
      %v529 = vpop.f32.mrb[0].mxu0
      %530 = vmatprep.mubr.bf16.mxu0 0
      %531 = vmatmul.mubr.bf16.gmra.mrb[0].mxu0 %v260
      %v532 = vpop.f32.mrb[0].mxu0
      %v533 = vadd.f32 0.0, %v532
      %v534 = vpop.f32.mrb[0].mxu0
      %v535 = vpop.f32.mrb[0].mxu0
      %v536 = vadd.f32 0.0, %v535
      %v537 = vpop.f32.mrb[0].mxu0
      %538 = vmatprep.mubr.bf16.mxu0 0
      %539 = vmatmul.mubr.bf16.gmra.mrb[0].mxu0 %v261
      %v540 = vpop.f32.mrb[0].mxu0
      %v541 = vadd.f32 0.0, %v540
      %v542 = vpop.f32.mrb[0].mxu0
      %v543 = vpop.f32.mrb[0].mxu0
      %v544 = vadd.f32 0.0, %v543
      %v545 = vpop.f32.mrb[0].mxu0
      %546 = vmatprep.mubr.bf16.mxu0 0
      %547 = vmatmul.mubr.bf16.gmra.mrb[0].mxu0 %v262
      %v548 = vpop.f32.mrb[0].mxu0
      %v549 = vadd.f32 0.0, %v548
      %v550 = vpop.f32.mrb[0].mxu0
      %v551 = vpop.f32.mrb[0].mxu0
      %v552 = vadd.f32 0.0, %v551
      %v553 = vpop.f32.mrb[0].mxu0
      %554 = vdwg.mxu0
      %v555 = vld [vmem:[%s124] sm:$0xff]
      %v556 = vld [vmem:[%s124 + $0x8] sm:$0xff]
      %v557 = vld [vmem:[%s124 + $0x10] sm:$0xff]
      %v558 = vld [vmem:[%s124 + $0x18] sm:$0xff]
      %v559 = vld [vmem:[%s124 + $0x20] sm:$0xff]
      %v560 = vld [vmem:[%s124 + $0x28] sm:$0xff]
      %v561 = vld [vmem:[%s124 + $0x30] sm:$0xff]
      %v562 = vld [vmem:[%s124 + $0x38] sm:$0xff]
      %v563 = vld [vmem:[%s124 + $0x40] sm:$0xff]
      %v564 = vld [vmem:[%s124 + $0x48] sm:$0xff]
      %v565 = vld [vmem:[%s124 + $0x50] sm:$0xff]
      %v566 = vld [vmem:[%s124 + $0x58] sm:$0xff]
      %v567 = vld [vmem:[%s124 + $0x60] sm:$0xff]
      %v568 = vld [vmem:[%s124 + $0x68] sm:$0xff]
      %v569 = vld [vmem:[%s124 + $0x70] sm:$0xff]
      %v570 = vld [vmem:[%s124 + $0x78] sm:$0xff]
      %s571 = sld [smem:[#allocation6 + $0x2]]
      %v572 = vstv %s571
      %v573 = vmul.f32 %v572, %v493
      %v574 = vmul.f32 %v572, %v496
      %v575 = vmul.f32 %v572, %v501
      %v576 = vmul.f32 %v572, %v504
      %v577 = vmul.f32 %v572, %v509
      %v578 = vmul.f32 %v572, %v512
      %v579 = vmul.f32 %v572, %v517
      %v580 = vmul.f32 %v572, %v520
      %v581 = vmul.f32 %v572, %v525
      %v582 = vmul.f32 %v572, %v528
      %v583 = vmul.f32 %v572, %v533
      %v584 = vmul.f32 %v572, %v536
      %v585 = vmul.f32 %v572, %v541
      %v586 = vmul.f32 %v572, %v544
      %v587 = vmul.f32 %v572, %v549
      %v588 = vmul.f32 %v572, %v552
      %v589 = vadd.f32 %v555, %v573
      %v590 = vadd.f32 %v556, %v574
      %v591 = vadd.f32 %v557, %v575
      %v592 = vadd.f32 %v558, %v576
      %v593 = vadd.f32 %v559, %v577
      %v594 = vadd.f32 %v560, %v578
      %v595 = vadd.f32 %v561, %v579
      %v596 = vadd.f32 %v562, %v580
      %v597 = vadd.f32 %v563, %v581
      %v598 = vadd.f32 %v564, %v582
      %v599 = vadd.f32 %v565, %v583
      %v600 = vadd.f32 %v566, %v584
      %v601 = vadd.f32 %v567, %v585
      %v602 = vadd.f32 %v568, %v586
      %v603 = vadd.f32 %v569, %v587
      %v604 = vadd.f32 %v570, %v588
      %605 = vst [vmem:[%s124] sm:$0xff] %v589
      %606 = vst [vmem:[%s124 + $0x8] sm:$0xff] %v590
      %607 = vst [vmem:[%s124 + $0x10] sm:$0xff] %v591
      %608 = vst [vmem:[%s124 + $0x18] sm:$0xff] %v592
      %609 = vst [vmem:[%s124 + $0x20] sm:$0xff] %v593
      %610 = vst [vmem:[%s124 + $0x28] sm:$0xff] %v594
      %611 = vst [vmem:[%s124 + $0x30] sm:$0xff] %v595
      %612 = vst [vmem:[%s124 + $0x38] sm:$0xff] %v596
      %613 = vst [vmem:[%s124 + $0x40] sm:$0xff] %v597
      %614 = vst [vmem:[%s124 + $0x48] sm:$0xff] %v598
      %615 = vst [vmem:[%s124 + $0x50] sm:$0xff] %v599
      %616 = vst [vmem:[%s124 + $0x58] sm:$0xff] %v600
      %617 = vst [vmem:[%s124 + $0x60] sm:$0xff] %v601
      %618 = vst [vmem:[%s124 + $0x68] sm:$0xff] %v602
      %619 = vst [vmem:[%s124 + $0x70] sm:$0xff] %v603
      %620 = vst [vmem:[%s124 + $0x78] sm:$0xff] %v604
      %v621 = vpack.c.bf16 %v496, %v493
      %v622 = vpack.c.bf16 %v504, %v501
      %v623 = vpack.c.bf16 %v512, %v509
      %v624 = vpack.c.bf16 %v520, %v517
      %v625 = vpack.c.bf16 %v528, %v525
      %v626 = vpack.c.bf16 %v536, %v533
      %v627 = vpack.c.bf16 %v544, %v541
      %v628 = vpack.c.bf16 %v552, %v549
      %629 = vst [vmem:[#allocation3] sm:$0xff] %v621
      %630 = vst [vmem:[#allocation3 + $0x8] sm:$0xff] %v622
      %631 = vst [vmem:[#allocation3 + $0x10] sm:$0xff] %v623
      %632 = vst [vmem:[#allocation3 + $0x18] sm:$0xff] %v624
      %633 = vst [vmem:[#allocation3 + $0x20] sm:$0xff] %v625
      %634 = vst [vmem:[#allocation3 + $0x28] sm:$0xff] %v626
      %635 = vst [vmem:[#allocation3 + $0x30] sm:$0xff] %v627
      %636 = vst [vmem:[#allocation3 + $0x38] sm:$0xff] %v628
      %p637 = scmp.lt.s32.totalorder %s20, 1
      %s638 = scalar_select %p637, %s20, 1
      %s639 = smul.addr %s638, 16
      %s640 = smul.addr %s639, 8
      %s641 = scalar_lea.vmem %s3, %s640
      // Predicated region
      $region59: #{_qgcn_forward_impl.1} parent=23 // pred_check
        %p642 = pneg %p64
      $region60: #{_qgcn_forward_impl.1} parent=23 // pred_check_branch
        %644 = sbr.rel (%p642) target = $region62
      $region61: #{_qgcn_forward_impl.1} parent=23 // pred_region
        _
      $region62: #{_qgcn_forward_impl.1} parent=23 // pred_fallthru
        _
    $region24: #{_qgcn_forward_impl.1} parent=5 // pred_fallthru
      _
    %p645 = scmp.le.s32.totalorder 2, %s15
    // Predicated region
    $region63: #{_qgcn_forward_impl.1} parent=5 // pred_check
      %p646 = pneg %p645
    $region64: #{_qgcn_forward_impl.1} parent=5 // pred_check_branch
      %648 = sbr.rel (%p646) target = $region66
    $region65: #{_qgcn_forward_impl.1} parent=5 // pred_region
      %s649 = ssub.s32 %s15, 2
      // Predicated region
      $region67: #{_qgcn_forward_impl.1} parent=65 // pred_check
        %p650 = pneg %p70
      $region68: #{_qgcn_forward_impl.1} parent=65 // pred_check_branch
        %652 = sbr.rel (%p650) target = $region70
      $region69: #{_qgcn_forward_impl.1} parent=65 // pred_region
        %p653 = scmp.lt.s32.totalorder %s21, 1
        %s654 = scalar_select %p653, %s21, 1
        %s655 = smul.addr %s654, 16
        %s656 = smul.addr %s655, 8
        %s657 = scalar_lea.vmem %s3, %s656
      $region70: #{_qgcn_forward_impl.1} parent=65 // pred_fallthru
        _
    $region66: #{_qgcn_forward_impl.1} parent=5 // pred_fallthru
      _
  $region6: #{_qgcn_forward_impl.1} parent=0 // loop_footer
    %s19 = sadd.s32 1, %s15
  $region7: #{_qgcn_forward_impl.1} parent=0 // loop_footer_branch
    %14 = sbr.rel target = $region3
  $region8: #{_qgcn_forward_impl.1} parent=0 // loop_exit
    _
  %658 = vsyncmov [#allocation4]
  %s659 = vpop.sfrf %658
  %p660 = scmp.eq.s32.totalorder %s659, 0
  %p661 = pneg %p660
  %663 = shalt.err (%p661)

</llo_original>
